<compile_context>
chip_gen: v6e
topology: v6e:2x2x1
jax: 0.10.0
libtpu: 0.0.40
codegen_flags: <defaults>
</compile_context>

<pallas_src>
import functools

import jax
import jax.numpy as jnp
from jax import lax
from jax.experimental import pallas as pl
from jax.experimental.pallas import tpu as pltpu

_POSE_DIM = 7                       # 3 translation + 4 quaternion components
_POSES_PER_ROW = 128                # poses per lane-dense row
_LANES = _POSE_DIM * _POSES_PER_ROW  # 896 = full-lane-width multiple of 7


def _cdiv(a, b):
    return -(-a // b)


def _abs_colsum_kernel(pred_ref, targ_ref, out_ref, *, tile_rows, rows_last,
                       last_s, last_i):
    """Accumulate per-lane sums of |pred - targ| over row tiles.

    Grid: (slice, row_tile).  The slice axis is 'parallel' (one per TensorCore
    on multi-core chips); the row-tile axis is the reduction axis.  The output
    block (1, W) for slice `s` stays resident across the row-tile axis.
    """
    s = pl.program_id(0)
    i = pl.program_id(1)

    @pl.when(i == 0)
    def _init():
        out_ref[...] = jnp.zeros_like(out_ref)

    # Native-dtype subtract/abs, widen to f32 only for the accumulate.
    diff = jnp.abs(pred_ref[...] - targ_ref[...]).astype(jnp.float32)

    if rows_last == tile_rows:
        # All tiles are full: steady state is just abs-diff + one axis-0 reduce.
        out_ref[...] += jnp.sum(diff, axis=0, keepdims=True)
    else:
        # The very last tile is partial (block extends past the array); mask
        # its out-of-bounds rows.  Only that single tile pays for the mask.
        is_partial = jnp.logical_and(s == last_s, i == last_i)

        @pl.when(jnp.logical_not(is_partial))
        def _full():
            out_ref[...] += jnp.sum(diff, axis=0, keepdims=True)

        @pl.when(is_partial)
        def _partial():
            row = lax.broadcasted_iota(jnp.int32, diff.shape, 0)
            masked = jnp.where(row < rows_last, diff, 0.0)
            out_ref[...] += jnp.sum(masked, axis=0, keepdims=True)


def posenet_criterion(pred, targ, *, sax=0.0, saq=0.0, q_loss_weight=1.0,
                      max_tile_rows=1024):
    """Pallas TPU implementation of PoseNetCriterion.forward.

    pred, targ: (N, 7) arrays (any float dtype).  Returns
    (loss, {'t_loss': ..., 'q_loss': ...}) as *device* scalars — no host sync;
    the caller decides when to block / call .item().
    """
    if isinstance(pred, tuple):
        pred = pred[0]
    pred = jnp.asarray(pred)
    targ = jnp.asarray(targ)
    n, d = pred.shape
    assert d == _POSE_DIM and targ.shape == (n, d)
    assert max_tile_rows >= 8 and max_tile_rows % 8 == 0

    sax = jnp.asarray(sax, jnp.float32)
    saq = jnp.asarray(saq, jnp.float32)
    qw = jnp.asarray(q_loss_weight, jnp.float32)

    # ---- choose the 2-D view the kernel streams over -------------------------
    m = n // _POSES_PER_ROW
    if m >= 1:
        # Lane-dense slab: (m, 896) f32, 128 poses per row.  Free bitcast
        # reshape when N % 128 == 0 (no pad / no copy); otherwise slice the
        # aligned prefix (at worst equivalent to the old pad) and handle the
        # <128-pose tail in the epilogue.
        width = _LANES
        n_main = m * _POSES_PER_ROW
        rows = m
        if n_main == n:
            pred_v = pred.reshape(rows, width)
            targ_v = targ.reshape(rows, width)
        else:
            pred_v = pred[:n_main].reshape(rows, width)
            targ_v = targ[:n_main].reshape(rows, width)
    else:
        # Fewer than 128 poses: single tiny block in the natural (N, 7) layout.
        width = _POSE_DIM
        n_main = n
        rows = n
        pred_v, targ_v = pred, targ

    # ---- tiling ---------------------------------------------------------------
    if rows <= max_tile_rows:
        tile_rows, num_tiles = rows, 1
    else:
        tile_rows, num_tiles = max_tile_rows, _cdiv(rows, max_tile_rows)

    # Leading 'parallel' axis: on v7x the two slices run on the two TensorCores
    # (each with its own partial-sum output row); on 1-TC chips it is just an
    # outer loop with negligible overhead.
    if num_tiles % 2 == 0:
        num_slices, tiles_per_slice = 2, num_tiles // 2
    else:
        num_slices, tiles_per_slice = 1, num_tiles

    rows_last = rows - (num_tiles - 1) * tile_rows  # valid rows of the final tile
    kernel = functools.partial(_abs_colsum_kernel, tile_rows=tile_rows,
                               rows_last=rows_last, last_s=num_slices - 1,
                               last_i=tiles_per_slice - 1)

    lane_sums = pl.pallas_call(
        kernel,
        out_shape=jax.ShapeDtypeStruct((num_slices, width), jnp.float32),
        grid=(num_slices, tiles_per_slice),
        in_specs=[
            pl.BlockSpec((tile_rows, width),
                         lambda s, i: (s * tiles_per_slice + i, 0)),
            pl.BlockSpec((tile_rows, width),
                         lambda s, i: (s * tiles_per_slice + i, 0)),
        ],
        out_specs=pl.BlockSpec((1, width), lambda s, i: (s, 0)),
        compiler_params=pltpu.CompilerParams(
            dimension_semantics=("parallel", "arbitrary"),
            vmem_limit_bytes=48 * 1024 * 1024),
    )(pred_v, targ_v)

    # ---- epilogue (runs once, tiny) -------------------------------------------
    per_lane = jnp.sum(lane_sums, axis=0)                       # (width,)
    is_t_lane = (jnp.arange(width) % _POSE_DIM) < 3             # lane -> t/q split
    t_sum = jnp.sum(jnp.where(is_t_lane, per_lane, 0.0))
    q_sum = jnp.sum(per_lane) - t_sum

    if n_main < n:
        # <128 leftover poses: tiny plain-JAX partial sum folded into the combine.
        dt = jnp.abs(pred[n_main:].astype(jnp.float32) -
                     targ[n_main:].astype(jnp.float32))
        t_sum = t_sum + jnp.sum(dt[:, :3])
        q_sum = q_sum + jnp.sum(dt[:, 3:])

    t_loss = t_sum / (3.0 * n)
    q_loss = qw * (q_sum / (4.0 * n))
    loss = jnp.exp(-sax) * t_loss + sax + jnp.exp(-saq) * q_loss + saq

    # TODO(synk): learn_beta / autograd of sax, saq is out of scope (forward only).
    # Device scalars (no .item(): avoids blocking host syncs, jit-safe).
    return loss, {"t_loss": t_loss, "q_loss": q_loss}


def _reference(pred, targ, sax, saq, q_loss_weight):
    t_loss = jnp.mean(jnp.abs(pred[:, :3] - targ[:, :3]))
    q_loss = q_loss_weight * jnp.mean(jnp.abs(pred[:, 3:] - targ[:, 3:]))
    loss = jnp.exp(-sax) * t_loss + sax + jnp.exp(-saq) * q_loss + saq
    return loss, t_loss, q_loss


def _check(a, b, tol=1e-4):
    a = float(a)
    b = float(b)
    assert abs(a - b) <= tol * max(1.0, abs(b)), (a, b)


if __name__ == "__main__":
    key = jax.random.PRNGKey(0)
    k1, k2, k3, k4, k5, k6 = jax.random.split(key, 6)

    # Primary small case: N x 7 pose batch, N % 128 == 0 -> copy-free lane-dense path.
    N = 256
    pred = jax.random.normal(k1, (N, _POSE_DIM), dtype=jnp.float32)
    targ = jax.random.normal(k2, (N, _POSE_DIM), dtype=jnp.float32)
    sax, saq, qw = 0.3, -0.2, 2.0
    loss, meta = posenet_criterion(pred, targ, sax=sax, saq=saq, q_loss_weight=qw)
    loss = jax.block_until_ready(loss)
    ref = _reference(pred, targ, sax, saq, qw)
    _check(loss, ref[0])
    _check(meta["t_loss"], ref[1])
    _check(meta["q_loss"], ref[2])

    # Unaligned batch (plain-JAX tail) with the default single-tile kernel path.
    N2 = 2000
    pred2 = jax.random.normal(k3, (N2, _POSE_DIM), dtype=jnp.float32)
    targ2 = jax.random.normal(k4, (N2, _POSE_DIM), dtype=jnp.float32)
    loss2, meta2 = posenet_criterion(pred2, targ2, sax=0.0, saq=0.0, q_loss_weight=1.0)
    jax.block_until_ready(loss2)
    ref2 = _reference(pred2, targ2, 0.0, 0.0, 1.0)
    _check(loss2, ref2[0])
    _check(meta2["t_loss"], ref2[1])
    _check(meta2["q_loss"], ref2[2])

    # Force the multi-tile grid: two 'parallel' slices + masked partial last tile.
    loss3, meta3 = posenet_criterion(pred2, targ2, sax=0.1, saq=0.2,
                                     q_loss_weight=0.5, max_tile_rows=8)
    jax.block_until_ready(loss3)
    ref3 = _reference(pred2, targ2, 0.1, 0.2, 0.5)
    _check(loss3, ref3[0])
    _check(meta3["t_loss"], ref3[1])
    _check(meta3["q_loss"], ref3[2])

    # Tiny batch (< 128 poses): kernel runs on the natural (N, 7) view.
    N4 = 8
    pred4 = jax.random.normal(k5, (N4, _POSE_DIM), dtype=jnp.float32)
    targ4 = jax.random.normal(k6, (N4, _POSE_DIM), dtype=jnp.float32)
    loss4, meta4 = posenet_criterion(pred4, targ4, sax=sax, saq=saq, q_loss_weight=qw)
    jax.block_until_ready(loss4)
    ref4 = _reference(pred4, targ4, sax, saq, qw)
    _check(loss4, ref4[0])
    _check(meta4["t_loss"], ref4[1])
    _check(meta4["q_loss"], ref4[2])

    print("KERNEL_OK")
</pallas_src>

<mosaic_0001>
module attributes {stable_mosaic.version = 11 : i64} {
  func.func @_abs_colsum_kernel(%arg0: i32, %arg1: i32, %arg2: memref<2x896xf32, #tpu.memory_space<vmem>>, %arg3: memref<2x896xf32, #tpu.memory_space<vmem>>, %arg4: memref<1x896xf32, #tpu.memory_space<vmem>>) attributes {dimension_semantics = [#tpu.dimension_semantics<parallel>, #tpu.dimension_semantics<arbitrary>], iteration_bounds = array<i64: 1, 1>, scalar_prefetch = 0 : i64, scratch_operands = 0 : i64, tpu.core_type = #tpu.core_type<tc>, window_params = [{transform_indices = @transform_0, window_bounds = array<i64: 2, 896>}, {transform_indices = @transform_1, window_bounds = array<i64: 2, 896>}, {transform_indices = @transform_2, window_bounds = array<i64: 1, 896>}]} {
    %c0_i32 = arith.constant 0 : i32
    %0 = arith.cmpi eq, %arg1, %c0_i32 : i32
    %1 = arith.extui %0 : i1 to i32
    %c0_i32_0 = arith.constant 0 : i32
    %2 = arith.cmpi ne, %1, %c0_i32_0 : i32
    scf.if %2 {
      %cst_8 = arith.constant 0.000000e+00 : f32
      %12 = vector.broadcast %cst_8 : f32 to vector<1x896xf32>
      %c0_9 = arith.constant 0 : index
      %c0_10 = arith.constant 0 : index
      %13 = vector.load %arg4[%c0_9, %c0_10] : memref<1x896xf32, #tpu.memory_space<vmem>>, vector<1x896xf32>
      tpu.vector_store %arg4[%c0_9, %c0_10], %12 {strides = array<i32>} : memref<1x896xf32, #tpu.memory_space<vmem>>, vector<1x896xf32>,
    } else {
    }
    %c0 = arith.constant 0 : index
    %c0_1 = arith.constant 0 : index
    %3 = vector.load %arg2[%c0, %c0_1] : memref<2x896xf32, #tpu.memory_space<vmem>>, vector<2x896xf32>
    %c0_2 = arith.constant 0 : index
    %c0_3 = arith.constant 0 : index
    %4 = vector.load %arg3[%c0_2, %c0_3] : memref<2x896xf32, #tpu.memory_space<vmem>>, vector<2x896xf32>
    %5 = arith.subf %3, %4 : vector<2x896xf32>
    %6 = math.absf %5 : vector<2x896xf32>
    %c0_4 = arith.constant 0 : index
    %c0_5 = arith.constant 0 : index
    %7 = vector.load %arg4[%c0_4, %c0_5] : memref<1x896xf32, #tpu.memory_space<vmem>>, vector<1x896xf32>
    %cst = arith.constant dense<0.000000e+00> : vector<896xf32>
    %8 = vector.multi_reduction <add>, %6, %cst [0] : vector<2x896xf32> to vector<896xf32>
    %9 = vector.shape_cast %8 : vector<896xf32> to vector<1x896xf32>
    %10 = arith.addf %7, %9 : vector<1x896xf32>
    %c0_6 = arith.constant 0 : index
    %c0_7 = arith.constant 0 : index
    %11 = vector.load %arg4[%c0_6, %c0_7] : memref<1x896xf32, #tpu.memory_space<vmem>>, vector<1x896xf32>
    tpu.vector_store %arg4[%c0_6, %c0_7], %10 {strides = array<i32>} : memref<1x896xf32, #tpu.memory_space<vmem>>, vector<1x896xf32>,
    return
  }
  func.func @transform_0(%arg0: i32, %arg1: i32) -> (i32, i32) {
    %c1_i32 = arith.constant 1 : i32
    %0 = arith.muli %arg0, %c1_i32 : i32
    %1 = arith.addi %0, %arg1 : i32
    %c0_i32 = arith.constant 0 : i32
    %c0_i32_0 = arith.constant 0 : i32
    return %1, %c0_i32 : i32, i32
  }
  func.func @transform_1(%arg0: i32, %arg1: i32) -> (i32, i32) {
    %c1_i32 = arith.constant 1 : i32
    %0 = arith.muli %arg0, %c1_i32 : i32
    %1 = arith.addi %0, %arg1 : i32
    %c0_i32 = arith.constant 0 : i32
    %c0_i32_0 = arith.constant 0 : i32
    return %1, %c0_i32 : i32, i32
  }
  func.func @transform_2(%arg0: i32, %arg1: i32) -> (i32, i32) {
    %c0_i32 = arith.constant 0 : i32
    %c0_i32_0 = arith.constant 0 : i32
    return %arg0, %c0_i32 : i32, i32
  }
}

</mosaic_0001>

<llo_original>
// kernel: tpu_custom_call.1
$region0: #{tpu_custom_call.1}
  #allocation0 [shape = 'u32[]', space=smem, size = 0x4, offset = 0x4, fixed_abs, tag = 'smem constant byte address 0x4 - core index']
  #allocation1 [shape = 'u32[144,128]{1,0:T(1,128)}', space=vmem, size = 0x12000, scoped, tag = 'internal scratch']
  %s0 = inlined_call_operand.hbm [shape: f32[2,896], index: 0, kind: input, shape index: {}]
  %s1 = inlined_call_operand.hbm [shape: f32[2,896], index: 1, kind: input, shape index: {}]
  %s2 = inlined_call_operand.hbm [shape: f32[1,896], index: 2, kind: output, shape index: {}]
  %s3 = sld [smem:[#allocation0]]
  $region30: #{tpu_custom_call.1} parent=0
    _
  %s5 = ssub.s32 1, %s3
  %s6 = scalar_select 0, %s5, %s3
  $region1: #{tpu_custom_call.1} parent=0
    #allocation2 [shape = 'u8[7168]{0}', space=vmem, size = 0x1c00, scoped, tag = 'input window, operand 0, single buffered']
    #allocation3 [shape = 's32[1]{0}', space=sflag, size = 0x4, scoped, tag = 'scoped memory for tpu_custom_call.1']
    #allocation4 [shape = 's32[1]{0}', space=sflag, size = 0x4, scoped, tag = 'scoped memory for tpu_custom_call.1']
    #allocation5 [shape = 'u8[7168]{0}', space=vmem, size = 0x1c00, scoped, tag = 'input window, operand 1, single buffered']
    #allocation6 [shape = 's32[1]{0}', space=sflag, size = 0x4, scoped, tag = 'scoped memory for tpu_custom_call.1']
    #allocation7 [shape = 'u8[3584]{0}', space=vmem, size = 0x1000, scoped, tag = 'output window, operand 0, single buffered']
    %7 = vsyncpa [#allocation3], 0
    %8 = vsyncpa [#allocation6], 0
    %9 = vsyncpa [#allocation4], 0
    // Predicated region
    $region2: #{tpu_custom_call.1} parent=1 // pred_check
      _
    $region3: #{tpu_custom_call.1} parent=1 // pred_check_branch
      %11 = sbr.rel (0) target = $region5
    $region4: #{tpu_custom_call.1} parent=1 // pred_region
      %s12 = sadd.s32 0, 0
      %s14 = ssub.s32 224, 224
      %15 = vsyncadd [#allocation3], %s14
      %s16 = smul.addr %s12, 7
      %s17 = smul.addr %s16, 32
      %s18 = scalar_lea.hbm %s0, %s17
      %s20 = sshll.u32 [#allocation2], 4
      %s21 = int_to_ptr.vmem [resolvable:$true] %s20
      %23 = dma.hbm_to_vmem [thread:$0]  %s18, 224, %s21, [#allocation3]
    $region5: #{tpu_custom_call.1} parent=1 // pred_fallthru
      _
    // Predicated region
    $region6: #{tpu_custom_call.1} parent=1 // pred_check
      _
    $region7: #{tpu_custom_call.1} parent=1 // pred_check_branch
      %25 = sbr.rel (0) target = $region9
    $region8: #{tpu_custom_call.1} parent=1 // pred_region
      %s26 = sadd.s32 0, 0
      %s28 = ssub.s32 224, 224
      %29 = vsyncadd [#allocation6], %s28
      %s30 = smul.addr %s26, 7
      %s31 = smul.addr %s30, 32
      %s32 = scalar_lea.hbm %s1, %s31
      %s34 = sshll.u32 [#allocation5], 4
      %s35 = int_to_ptr.vmem [resolvable:$true] %s34
      %37 = dma.hbm_to_vmem [thread:$0]  %s32, 224, %s35, [#allocation6]
    $region9: #{tpu_custom_call.1} parent=1 // pred_fallthru
      _
    // Predicated region
    $region10: #{tpu_custom_call.1} parent=1 // pred_check
      _
    $region11: #{tpu_custom_call.1} parent=1 // pred_check_branch
      %39 = sbr.rel (0) target = $region13
    $region12: #{tpu_custom_call.1} parent=1 // pred_region
      %40 = dma.done [#allocation3], 224
    $region13: #{tpu_custom_call.1} parent=1 // pred_fallthru
      _
    // Predicated region
    $region14: #{tpu_custom_call.1} parent=1 // pred_check
      _
    $region15: #{tpu_custom_call.1} parent=1 // pred_check_branch
      %42 = sbr.rel (0) target = $region17
    $region16: #{tpu_custom_call.1} parent=1 // pred_region
      %43 = dma.done [#allocation6], 224
    $region17: #{tpu_custom_call.1} parent=1 // pred_fallthru
      _
    %s44 = sadd.s32 0, 0
    %s45 = sadd.s32 0, 0
    %p46 = scmp.eq.s32.totalorder 0, 0
    // Predicated region
    $region18: #{tpu_custom_call.1} parent=1 // pred_check
      %p47 = pneg %p46
    $region19: #{tpu_custom_call.1} parent=1 // pred_check_branch
      %49 = sbr.rel (%p47) target = $region21
    $region20: #{tpu_custom_call.1} parent=1 // pred_region
      %v50 = vlaneseq
      %vm51 = vcmp.ge.s32.totalorder %v50, 0
      %vm52 = vcmp.lt.s32.totalorder %v50, 896
      %vm53 = vmand %vm51, %vm52
      %54 = vst.msk [vmem:[#allocation7] sm:$0x7f] %vm53, 0.0
    $region21: #{tpu_custom_call.1} parent=1 // pred_fallthru
      _
    %v55 = vld [vmem:[#allocation2] sm:$0xff]
    %v56 = vld [vmem:[#allocation2 + $0x8] sm:$0x3f]
    %v57 = vld [vmem:[#allocation5] sm:$0xff]
    %v58 = vld [vmem:[#allocation5 + $0x8] sm:$0x3f]
    %v59 = vsub.f32 %v55, %v57
    %v60 = vsub.f32 %v56, %v58
    %v61 = vand.u32 2147483647, %v59
    %v62 = vand.u32 2147483647, %v60
    %v63 = vld [vmem:[#allocation7] sm:$0xff]
    %v66 = vcombine.high %v61, %v61
    %v68 = vunpack.c.l.s4 1983009808
    %v69 = vunpack.c.0.s8 %v68
    %v70 = vlaneseq
    %v71 = vshrl.u32 %v70, 7
    %v72 = vsub.s32 %v69, %v71
    %v73 = vrot.slane %v61, %v72
    %v75 = vunpack.c.l.s4 1983009808
    %v76 = vunpack.c.0.s8 %v75
    %v77 = vlaneseq
    %v78 = vshrl.u32 %v77, 7
    %v79 = vsub.s32 %v76, %v78
    %v80 = vrot.slane %v66, %v79
    %v81 = vcombine.high %v73, %v73
    %v82 = vcombine.high %v80, %v80
    %v83 = vcombine.high %v62, %v62
    %v85 = vunpack.c.l.s4 1983009808
    %v86 = vunpack.c.0.s8 %v85
    %v87 = vlaneseq
    %v88 = vshrl.u32 %v87, 7
    %v89 = vsub.s32 %v86, %v88
    %v90 = vrot.slane %v62, %v89
    %v92 = vunpack.c.l.s4 1983009808
    %v93 = vunpack.c.0.s8 %v92
    %v94 = vlaneseq
    %v95 = vshrl.u32 %v94, 7
    %v96 = vsub.s32 %v93, %v95
    %v97 = vrot.slane %v83, %v96
    %v98 = vcombine.high %v90, %v90
    %vm106 = vcmask 1041408
    %v107 = vsel %vm106, %v73, 0.0
    %v108 = vrot.slane %v107, 4
    %v109 = vadd.f32 %v107, %v108
    %v110 = vrot.slane %v109, 2
    %v111 = vadd.f32 %v109, %v110
    %v112 = vrot.slane %v111, 1
    %v113 = vadd.f32 %v111, %v112
    %v114 = vsel %vm106, %v81, 0.0
    %v115 = vrot.slane %v114, 4
    %v116 = vadd.f32 %v114, %v115
    %v117 = vrot.slane %v116, 2
    %v118 = vadd.f32 %v116, %v117
    %v119 = vrot.slane %v118, 1
    %v120 = vadd.f32 %v118, %v119
    %v121 = vsel %vm106, %v80, 0.0
    %v122 = vrot.slane %v121, 4
    %v123 = vadd.f32 %v121, %v122
    %v124 = vrot.slane %v123, 2
    %v125 = vadd.f32 %v123, %v124
    %v126 = vrot.slane %v125, 1
    %v127 = vadd.f32 %v125, %v126
    %v128 = vsel %vm106, %v82, 0.0
    %v129 = vrot.slane %v128, 4
    %v130 = vadd.f32 %v128, %v129
    %v131 = vrot.slane %v130, 2
    %v132 = vadd.f32 %v130, %v131
    %v133 = vrot.slane %v132, 1
    %v134 = vadd.f32 %v132, %v133
    %v135 = vsel %vm106, %v90, 0.0
    %v136 = vrot.slane %v135, 4
    %v137 = vadd.f32 %v135, %v136
    %v138 = vrot.slane %v137, 2
    %v139 = vadd.f32 %v137, %v138
    %v140 = vrot.slane %v139, 1
    %v141 = vadd.f32 %v139, %v140
    %v142 = vsel %vm106, %v98, 0.0
    %v143 = vrot.slane %v142, 4
    %v144 = vadd.f32 %v142, %v143
    %v145 = vrot.slane %v144, 2
    %v146 = vadd.f32 %v144, %v145
    %v147 = vrot.slane %v146, 1
    %v148 = vadd.f32 %v146, %v147
    %v149 = vsel %vm106, %v97, 0.0
    %v150 = vrot.slane %v149, 4
    %v151 = vadd.f32 %v149, %v150
    %v152 = vrot.slane %v151, 2
    %v153 = vadd.f32 %v151, %v152
    %v154 = vrot.slane %v153, 1
    %v155 = vadd.f32 %v153, %v154
    %v163 = vcombine.low %v113, %v120
    %v164 = vcombine.low %v127, %v134
    %v165 = vcombine.low %v141, %v148
    %v167 = vunpack.c.l.s4 1966171168
    %v168 = vunpack.c.0.s8 %v167
    %v169 = vlaneseq
    %v170 = vshrl.u32 %v169, 7
    %v171 = vsub.s32 %v168, %v170
    %v172 = vrot.slane %v163, %v171
    %v174 = vunpack.c.l.s4 1966171168
    %v175 = vunpack.c.0.s8 %v174
    %v176 = vlaneseq
    %v177 = vshrl.u32 %v176, 7
    %v178 = vsub.s32 %v175, %v177
    %v179 = vrot.slane %v164, %v178
    %v181 = vunpack.c.l.s4 1966171168
    %v182 = vunpack.c.0.s8 %v181
    %v183 = vlaneseq
    %v184 = vshrl.u32 %v183, 7
    %v185 = vsub.s32 %v182, %v184
    %v186 = vrot.slane %v165, %v185
    %v188 = vunpack.c.l.s4 1966171168
    %v189 = vunpack.c.0.s8 %v188
    %v190 = vlaneseq
    %v191 = vshrl.u32 %v190, 7
    %v192 = vsub.s32 %v189, %v191
    %v193 = vrot.slane %v155, %v192
    %v194 = vcombine.low %v172, %v179
    %v195 = vcombine.low %v186, %v193
    %v197 = vunpack.c.l.s4 1966171168
    %v198 = vunpack.c.0.s8 %v197
    %v199 = vlaneseq
    %v200 = vshrl.u32 %v199, 7
    %v201 = vsub.s32 %v198, %v200
    %v202 = vrot.slane %v194, %v201
    %v204 = vunpack.c.l.s4 1966171168
    %v205 = vunpack.c.0.s8 %v204
    %v206 = vlaneseq
    %v207 = vshrl.u32 %v206, 7
    %v208 = vsub.s32 %v205, %v207
    %v209 = vrot.slane %v195, %v208
    %v210 = vcombine.low %v202, %v209
    %v212 = vadd.f32 %v63, %v210
    %v213 = vlaneseq
    %vm214 = vcmp.ge.s32.totalorder %v213, 0
    %vm215 = vcmp.lt.s32.totalorder %v213, 896
    %vm216 = vmand %vm214, %vm215
    %217 = vst.msk [vmem:[#allocation7] sm:$0x7f] %vm216, %v212
    // Predicated region
    $region22: #{tpu_custom_call.1} parent=1 // pred_check
      _
    $region23: #{tpu_custom_call.1} parent=1 // pred_check_branch
      %219 = sbr.rel (0) target = $region25
    $region24: #{tpu_custom_call.1} parent=1 // pred_region
      %s221 = ssub.s32 112, 112
      %222 = vsyncadd [#allocation4], %s221
      %s224 = sshll.u32 [#allocation7], 4
      %s225 = int_to_ptr.vmem [resolvable:$true] %s224
      %227 = dma.vmem_to_hbm [thread:$0]  %s225, 112, %s2, [#allocation4]
    $region25: #{tpu_custom_call.1} parent=1 // pred_fallthru
      _
    // Predicated region
    $region26: #{tpu_custom_call.1} parent=1 // pred_check
      _
    $region27: #{tpu_custom_call.1} parent=1 // pred_check_branch
      %229 = sbr.rel (0) target = $region29
    $region28: #{tpu_custom_call.1} parent=1 // pred_region
      %230 = dma.done [#allocation4], 112
    $region29: #{tpu_custom_call.1} parent=1 // pred_fallthru
      _
    %231 = vsyncpa [#allocation3], 1
    %232 = vsyncpa [#allocation6], 1
    %233 = vsyncpa [#allocation4], 1

</llo_original>
